<compile_context>
chip_gen: v7x
topology: tpu7x:2x2x1
jax: 0.10.0
libtpu: 0.0.40
codegen_flags: <defaults>
</compile_context>

<pallas_src>
import functools

import jax
import jax.numpy as jnp
import numpy as np
from jax.experimental import pallas as pl
from jax.experimental.pallas import tpu as pltpu


def bpr_kernel(u_idx_ref, p_idx_ref, n_idx_ref,      # scalar-prefetch (SMEM)
               user_tbl_ref, item_tbl_ref,            # resident VMEM tables
               out_ref,                                # (1,1) SMEM scalar out
               u_slab, p_slab, n_slab, acc_ref,        # scratch
               *, b_total, b_tile, d, reg_bias, reg_latent):
    step = pl.program_id(0)

    # ---- init accumulators on the first grid step ----
    @pl.when(step == 0)
    def _():
        for k in range(4):
            acc_ref[k] = jnp.float32(0.0)

    # ---- fused gather: pull this tile's rows out of the resident tables ----
    # (static destination row, dynamic sublane-indexed load from the VMEM table)
    for r in range(b_tile):
        b = step * b_tile + r
        u_slab[r, :] = user_tbl_ref[u_idx_ref[b], :]        # (d,)
        p_slab[r, :] = item_tbl_ref[p_idx_ref[b], :]        # (d+1,) last col = bias
        n_slab[r, :] = item_tbl_ref[n_idx_ref[b], :]        # (d+1,)

    u = u_slab[...]                       # (b_tile, d)
    p_aug = p_slab[...]                   # (b_tile, d+1)
    n_aug = n_slab[...]
    p, pb = p_aug[:, :d], p_aug[:, d:]    # (b_tile, d), (b_tile, 1)
    n, nb = n_aug[:, :d], n_aug[:, d:]

    # validity mask for padded rows (B not a multiple of the tile).  Padded
    # indices were set to 0, so all gathered values are finite -> a plain
    # 0-multiply mask is safe (no jnp.where needed).
    rows = step * b_tile + jax.lax.broadcasted_iota(jnp.int32, (b_tile, 1), 0)
    validf = (rows < b_total).astype(jnp.float32)            # (b_tile, 1)

    # ---- BPR loss terms for this tile ----
    pos_scores = jnp.sum(u * p, axis=1, keepdims=True) + pb  # (b_tile, 1)
    neg_scores = jnp.sum(u * n, axis=1, keepdims=True) + nb
    diff = pos_scores - neg_scores

    # numerically stable sigmoid, then the reference's -log(sigmoid + 1e-10)
    e = jnp.exp(-jnp.abs(diff))
    sig = jnp.where(diff >= 0, 1.0 / (1.0 + e), e / (1.0 + e))
    nll = -jnp.log(sig + 1e-10)                              # (b_tile, 1)

    acc_ref[0] = acc_ref[0] + jnp.sum(nll * validf)                       # Σ nll
    acc_ref[1] = acc_ref[1] + jnp.sum(pb * pb * validf)                   # Σ pb^2
    acc_ref[2] = acc_ref[2] + jnp.sum(nb * nb * validf)                   # Σ nb^2
    acc_ref[3] = acc_ref[3] + jnp.sum((u * u + p * p + n * n) * validf)   # Σ latent^2

    # ---- finalize on the last grid step: mean / sqrt / reg weights ----
    @pl.when(step == pl.num_programs(0) - 1)
    def _():
        loss = acc_ref[0] * (1.0 / float(b_total))
        reg = reg_bias * 0.5 * (jnp.sqrt(acc_ref[1]) + jnp.sqrt(acc_ref[2]))
        reg = reg + reg_latent * acc_ref[3]
        out_ref[0, 0] = loss + reg


def bpr_forward(user_factors, item_factors, item_bias,
                user_indices, pos_item_indices, neg_item_indices,
                reg_bias=0.00013, reg_latent=0.00018, b_tile=8):
    B = int(user_indices.shape[0])
    U, D = user_factors.shape
    I = item_factors.shape[0]

    # fold the bias into the item table as an extra lane column (tiny, one-shot)
    item_aug = jnp.concatenate(
        [item_factors, item_bias.reshape(I, 1).astype(item_factors.dtype)], axis=1)

    num_tiles = pl.cdiv(B, b_tile)
    pad = num_tiles * b_tile - B

    def pad_idx(idx):
        return jnp.pad(idx.astype(jnp.int32), (0, pad))

    u_idx = pad_idx(user_indices)
    p_idx = pad_idx(pos_item_indices)
    n_idx = pad_idx(neg_item_indices)

    kernel = functools.partial(
        bpr_kernel, b_total=B, b_tile=b_tile, d=int(D),
        reg_bias=float(reg_bias), reg_latent=float(reg_latent))

    grid_spec = pltpu.PrefetchScalarGridSpec(
        num_scalar_prefetch=3,
        grid=(num_tiles,),
        in_specs=[
            pl.BlockSpec((U, D), lambda i, *_: (0, 0)),        # user table, resident
            pl.BlockSpec((I, D + 1), lambda i, *_: (0, 0)),    # item|bias table, resident
        ],
        out_specs=pl.BlockSpec(memory_space=pltpu.MemorySpace.SMEM),
        scratch_shapes=[
            pltpu.VMEM((b_tile, D), jnp.float32),        # gathered user rows
            pltpu.VMEM((b_tile, D + 1), jnp.float32),    # gathered pos item rows (+bias)
            pltpu.VMEM((b_tile, D + 1), jnp.float32),    # gathered neg item rows (+bias)
            pltpu.SMEM((4,), jnp.float32),               # partial-sum accumulators
        ],
    )

    out = pl.pallas_call(
        kernel,
        out_shape=jax.ShapeDtypeStruct((1, 1), jnp.float32),
        grid_spec=grid_spec,
        compiler_params=pltpu.CompilerParams(
            dimension_semantics=("arbitrary",)),   # batch grid is a reduction axis
    )(u_idx, p_idx, n_idx, user_factors, item_aug)
    return out[0, 0]


def bpr_forward_ref(user_factors, item_factors, item_bias,
                    user_indices, pos_item_indices, neg_item_indices,
                    reg_bias=0.00013, reg_latent=0.00018):
    # pure-JAX reference mirroring the PyTorch forward exactly
    u = user_factors[user_indices]
    p = item_factors[pos_item_indices]
    n = item_factors[neg_item_indices]
    pb = item_bias[pos_item_indices, 0]
    nb = item_bias[neg_item_indices, 0]
    pos_scores = (u * p).sum(axis=1) + pb
    neg_scores = (u * n).sum(axis=1) + nb
    loss = -jnp.mean(jnp.log(jax.nn.sigmoid(pos_scores - neg_scores) + 1e-10))
    reg = reg_bias * (jnp.linalg.norm(pb) + jnp.linalg.norm(nb)) / 2
    reg = reg + reg_latent * (jnp.sum(u * u) + jnp.sum(p * p) + jnp.sum(n * n))
    return loss + reg


if __name__ == "__main__":
    num_users = 32
    num_items = 64
    latent_dim = 10
    batch = 20            # deliberately NOT a multiple of the tile (8) -> exercises masking
    reg_bias = 0.00013
    reg_latent = 0.00018

    key = jax.random.PRNGKey(0)
    k_uf, k_if, k_b, k_u, k_p, k_n = jax.random.split(key, 6)

    # parameters (torch init uses zeros for item_bias; use small random values
    # here so the bias path is actually validated numerically)
    user_factors = 0.01 * jax.random.normal(k_uf, (num_users, latent_dim), jnp.float32)
    item_factors = 0.01 * jax.random.normal(k_if, (num_items, latent_dim), jnp.float32)
    item_bias = 0.01 * jax.random.normal(k_b, (num_items, 1), jnp.float32)

    user_indices = jax.random.randint(k_u, (batch,), 0, num_users, jnp.int32)
    pos_item_indices = jax.random.randint(k_p, (batch,), 0, num_items, jnp.int32)
    neg_item_indices = jax.random.randint(k_n, (batch,), 0, num_items, jnp.int32)

    loss = bpr_forward(user_factors, item_factors, item_bias,
                       user_indices, pos_item_indices, neg_item_indices,
                       reg_bias, reg_latent)
    loss = jax.block_until_ready(loss)

    loss_ref = bpr_forward_ref(user_factors, item_factors, item_bias,
                               user_indices, pos_item_indices, neg_item_indices,
                               reg_bias, reg_latent)
    np.testing.assert_allclose(np.asarray(loss), np.asarray(loss_ref),
                               rtol=1e-5, atol=1e-6)

    print("KERNEL_OK")
</pallas_src>

<mosaic_0001>
module attributes {stable_mosaic.version = 11 : i64} {
  func.func @bpr_kernel(%arg0: i32, %arg1: memref<24xi32, #tpu.memory_space<smem>>, %arg2: memref<24xi32, #tpu.memory_space<smem>>, %arg3: memref<24xi32, #tpu.memory_space<smem>>, %arg4: memref<32x10xf32, #tpu.memory_space<vmem>>, %arg5: memref<64x11xf32, #tpu.memory_space<vmem>>, %arg6: memref<1x1xf32, #tpu.memory_space<smem>>, %arg7: memref<8x10xf32, #tpu.memory_space<vmem>>, %arg8: memref<8x11xf32, #tpu.memory_space<vmem>>, %arg9: memref<8x11xf32, #tpu.memory_space<vmem>>, %arg10: memref<4xf32, #tpu.memory_space<smem>>) attributes {dimension_semantics = [#tpu.dimension_semantics<arbitrary>], iteration_bounds = array<i64: 3>, scalar_prefetch = 3 : i64, scratch_operands = 4 : i64, tpu.core_type = #tpu.core_type<tc>, window_params = [{pipeline_mode = #tpu.pipeline_mode<synchronous>, transform_indices = @transform_0, window_bounds = array<i64: 32, 10>}, {pipeline_mode = #tpu.pipeline_mode<synchronous>, transform_indices = @transform_1, window_bounds = array<i64: 64, 11>}, {transform_indices = @transform_2, window_bounds = array<i64: 1, 1>}]} {
    %c0_i32 = arith.constant 0 : i32
    %0 = arith.cmpi eq, %arg0, %c0_i32 : i32
    %1 = arith.extui %0 : i1 to i32
    %c0_i32_0 = arith.constant 0 : i32
    %2 = arith.cmpi ne, %1, %c0_i32_0 : i32
    scf.if %2 {
      %cst_102 = arith.constant 0.000000e+00 : f32
      %c0_103 = arith.constant 0 : index
      %297 = memref.load %arg10[%c0_103] : memref<4xf32, #tpu.memory_space<smem>>
      memref.store %cst_102, %arg10[%c0_103] : memref<4xf32, #tpu.memory_space<smem>>
      %cst_104 = arith.constant 0.000000e+00 : f32
      %c1_105 = arith.constant 1 : index
      %298 = memref.load %arg10[%c1_105] : memref<4xf32, #tpu.memory_space<smem>>
      memref.store %cst_104, %arg10[%c1_105] : memref<4xf32, #tpu.memory_space<smem>>
      %cst_106 = arith.constant 0.000000e+00 : f32
      %c2_107 = arith.constant 2 : index
      %299 = memref.load %arg10[%c2_107] : memref<4xf32, #tpu.memory_space<smem>>
      memref.store %cst_106, %arg10[%c2_107] : memref<4xf32, #tpu.memory_space<smem>>
      %cst_108 = arith.constant 0.000000e+00 : f32
      %c3_109 = arith.constant 3 : index
      %300 = memref.load %arg10[%c3_109] : memref<4xf32, #tpu.memory_space<smem>>
      memref.store %cst_108, %arg10[%c3_109] : memref<4xf32, #tpu.memory_space<smem>>
    } else {
    }
    %c8_i32 = arith.constant 8 : i32
    %3 = arith.muli %arg0, %c8_i32 : i32
    %c0_i32_1 = arith.constant 0 : i32
    %4 = arith.addi %3, %c0_i32_1 : i32
    %5 = arith.index_cast %4 : i32 to index
    %6 = memref.load %arg1[%5] : memref<24xi32, #tpu.memory_space<smem>>
    %7 = arith.index_cast %6 : i32 to index
    %c0 = arith.constant 0 : index
    %8 = vector.load %arg4[%7, %c0] : memref<32x10xf32, #tpu.memory_space<vmem>>, vector<1x10xf32>
    %9 = vector.shape_cast %8 : vector<1x10xf32> to vector<10xf32>
    %c0_2 = arith.constant 0 : index
    %c0_3 = arith.constant 0 : index
    %10 = vector.load %arg7[%c0_2, %c0_3] : memref<8x10xf32, #tpu.memory_space<vmem>>, vector<1x10xf32>
    %11 = vector.shape_cast %10 : vector<1x10xf32> to vector<10xf32>
    %12 = vector.shape_cast %9 : vector<10xf32> to vector<1x10xf32>
    tpu.vector_store %arg7[%c0_2, %c0_3], %12 {strides = array<i32>} : memref<8x10xf32, #tpu.memory_space<vmem>>, vector<1x10xf32>,
    %13 = arith.index_cast %4 : i32 to index
    %14 = memref.load %arg2[%13] : memref<24xi32, #tpu.memory_space<smem>>
    %15 = arith.index_cast %14 : i32 to index
    %c0_4 = arith.constant 0 : index
    %16 = vector.load %arg5[%15, %c0_4] : memref<64x11xf32, #tpu.memory_space<vmem>>, vector<1x11xf32>
    %17 = vector.shape_cast %16 : vector<1x11xf32> to vector<11xf32>
    %c0_5 = arith.constant 0 : index
    %c0_6 = arith.constant 0 : index
    %18 = vector.load %arg8[%c0_5, %c0_6] : memref<8x11xf32, #tpu.memory_space<vmem>>, vector<1x11xf32>
    %19 = vector.shape_cast %18 : vector<1x11xf32> to vector<11xf32>
    %20 = vector.shape_cast %17 : vector<11xf32> to vector<1x11xf32>
    tpu.vector_store %arg8[%c0_5, %c0_6], %20 {strides = array<i32>} : memref<8x11xf32, #tpu.memory_space<vmem>>, vector<1x11xf32>,
    %21 = arith.index_cast %4 : i32 to index
    %22 = memref.load %arg3[%21] : memref<24xi32, #tpu.memory_space<smem>>
    %23 = arith.index_cast %22 : i32 to index
    %c0_7 = arith.constant 0 : index
    %24 = vector.load %arg5[%23, %c0_7] : memref<64x11xf32, #tpu.memory_space<vmem>>, vector<1x11xf32>
    %25 = vector.shape_cast %24 : vector<1x11xf32> to vector<11xf32>
    %c0_8 = arith.constant 0 : index
    %c0_9 = arith.constant 0 : index
    %26 = vector.load %arg9[%c0_8, %c0_9] : memref<8x11xf32, #tpu.memory_space<vmem>>, vector<1x11xf32>
    %27 = vector.shape_cast %26 : vector<1x11xf32> to vector<11xf32>
    %28 = vector.shape_cast %25 : vector<11xf32> to vector<1x11xf32>
    tpu.vector_store %arg9[%c0_8, %c0_9], %28 {strides = array<i32>} : memref<8x11xf32, #tpu.memory_space<vmem>>, vector<1x11xf32>,
    %c8_i32_10 = arith.constant 8 : i32
    %29 = arith.muli %arg0, %c8_i32_10 : i32
    %c1_i32 = arith.constant 1 : i32
    %30 = arith.addi %29, %c1_i32 : i32
    %31 = arith.index_cast %30 : i32 to index
    %32 = memref.load %arg1[%31] : memref<24xi32, #tpu.memory_space<smem>>
    %33 = arith.index_cast %32 : i32 to index
    %c0_11 = arith.constant 0 : index
    %34 = vector.load %arg4[%33, %c0_11] : memref<32x10xf32, #tpu.memory_space<vmem>>, vector<1x10xf32>
    %35 = vector.shape_cast %34 : vector<1x10xf32> to vector<10xf32>
    %c1 = arith.constant 1 : index
    %c0_12 = arith.constant 0 : index
    %36 = vector.load %arg7[%c1, %c0_12] : memref<8x10xf32, #tpu.memory_space<vmem>>, vector<1x10xf32>
    %37 = vector.shape_cast %36 : vector<1x10xf32> to vector<10xf32>
    %38 = vector.shape_cast %35 : vector<10xf32> to vector<1x10xf32>
    tpu.vector_store %arg7[%c1, %c0_12], %38 {strides = array<i32>} : memref<8x10xf32, #tpu.memory_space<vmem>>, vector<1x10xf32>,
    %39 = arith.index_cast %30 : i32 to index
    %40 = memref.load %arg2[%39] : memref<24xi32, #tpu.memory_space<smem>>
    %41 = arith.index_cast %40 : i32 to index
    %c0_13 = arith.constant 0 : index
    %42 = vector.load %arg5[%41, %c0_13] : memref<64x11xf32, #tpu.memory_space<vmem>>, vector<1x11xf32>
    %43 = vector.shape_cast %42 : vector<1x11xf32> to vector<11xf32>
    %c1_14 = arith.constant 1 : index
    %c0_15 = arith.constant 0 : index
    %44 = vector.load %arg8[%c1_14, %c0_15] : memref<8x11xf32, #tpu.memory_space<vmem>>, vector<1x11xf32>
    %45 = vector.shape_cast %44 : vector<1x11xf32> to vector<11xf32>
    %46 = vector.shape_cast %43 : vector<11xf32> to vector<1x11xf32>
    tpu.vector_store %arg8[%c1_14, %c0_15], %46 {strides = array<i32>} : memref<8x11xf32, #tpu.memory_space<vmem>>, vector<1x11xf32>,
    %47 = arith.index_cast %30 : i32 to index
    %48 = memref.load %arg3[%47] : memref<24xi32, #tpu.memory_space<smem>>
    %49 = arith.index_cast %48 : i32 to index
    %c0_16 = arith.constant 0 : index
    %50 = vector.load %arg5[%49, %c0_16] : memref<64x11xf32, #tpu.memory_space<vmem>>, vector<1x11xf32>
    %51 = vector.shape_cast %50 : vector<1x11xf32> to vector<11xf32>
    %c1_17 = arith.constant 1 : index
    %c0_18 = arith.constant 0 : index
    %52 = vector.load %arg9[%c1_17, %c0_18] : memref<8x11xf32, #tpu.memory_space<vmem>>, vector<1x11xf32>
    %53 = vector.shape_cast %52 : vector<1x11xf32> to vector<11xf32>
    %54 = vector.shape_cast %51 : vector<11xf32> to vector<1x11xf32>
    tpu.vector_store %arg9[%c1_17, %c0_18], %54 {strides = array<i32>} : memref<8x11xf32, #tpu.memory_space<vmem>>, vector<1x11xf32>,
    %c8_i32_19 = arith.constant 8 : i32
    %55 = arith.muli %arg0, %c8_i32_19 : i32
    %c2_i32 = arith.constant 2 : i32
    %56 = arith.addi %55, %c2_i32 : i32
    %57 = arith.index_cast %56 : i32 to index
    %58 = memref.load %arg1[%57] : memref<24xi32, #tpu.memory_space<smem>>
    %59 = arith.index_cast %58 : i32 to index
    %c0_20 = arith.constant 0 : index
    %60 = vector.load %arg4[%59, %c0_20] : memref<32x10xf32, #tpu.memory_space<vmem>>, vector<1x10xf32>
    %61 = vector.shape_cast %60 : vector<1x10xf32> to vector<10xf32>
    %c2 = arith.constant 2 : index
    %c0_21 = arith.constant 0 : index
    %62 = vector.load %arg7[%c2, %c0_21] : memref<8x10xf32, #tpu.memory_space<vmem>>, vector<1x10xf32>
    %63 = vector.shape_cast %62 : vector<1x10xf32> to vector<10xf32>
    %64 = vector.shape_cast %61 : vector<10xf32> to vector<1x10xf32>
    tpu.vector_store %arg7[%c2, %c0_21], %64 {strides = array<i32>} : memref<8x10xf32, #tpu.memory_space<vmem>>, vector<1x10xf32>,
    %65 = arith.index_cast %56 : i32 to index
    %66 = memref.load %arg2[%65] : memref<24xi32, #tpu.memory_space<smem>>
    %67 = arith.index_cast %66 : i32 to index
    %c0_22 = arith.constant 0 : index
    %68 = vector.load %arg5[%67, %c0_22] : memref<64x11xf32, #tpu.memory_space<vmem>>, vector<1x11xf32>
    %69 = vector.shape_cast %68 : vector<1x11xf32> to vector<11xf32>
    %c2_23 = arith.constant 2 : index
    %c0_24 = arith.constant 0 : index
    %70 = vector.load %arg8[%c2_23, %c0_24] : memref<8x11xf32, #tpu.memory_space<vmem>>, vector<1x11xf32>
    %71 = vector.shape_cast %70 : vector<1x11xf32> to vector<11xf32>
    %72 = vector.shape_cast %69 : vector<11xf32> to vector<1x11xf32>
    tpu.vector_store %arg8[%c2_23, %c0_24], %72 {strides = array<i32>} : memref<8x11xf32, #tpu.memory_space<vmem>>, vector<1x11xf32>,
    %73 = arith.index_cast %56 : i32 to index
    %74 = memref.load %arg3[%73] : memref<24xi32, #tpu.memory_space<smem>>
    %75 = arith.index_cast %74 : i32 to index
    %c0_25 = arith.constant 0 : index
    %76 = vector.load %arg5[%75, %c0_25] : memref<64x11xf32, #tpu.memory_space<vmem>>, vector<1x11xf32>
    %77 = vector.shape_cast %76 : vector<1x11xf32> to vector<11xf32>
    %c2_26 = arith.constant 2 : index
    %c0_27 = arith.constant 0 : index
    %78 = vector.load %arg9[%c2_26, %c0_27] : memref<8x11xf32, #tpu.memory_space<vmem>>, vector<1x11xf32>
    %79 = vector.shape_cast %78 : vector<1x11xf32> to vector<11xf32>
    %80 = vector.shape_cast %77 : vector<11xf32> to vector<1x11xf32>
    tpu.vector_store %arg9[%c2_26, %c0_27], %80 {strides = array<i32>} : memref<8x11xf32, #tpu.memory_space<vmem>>, vector<1x11xf32>,
    %c8_i32_28 = arith.constant 8 : i32
    %81 = arith.muli %arg0, %c8_i32_28 : i32
    %c3_i32 = arith.constant 3 : i32
    %82 = arith.addi %81, %c3_i32 : i32
    %83 = arith.index_cast %82 : i32 to index
    %84 = memref.load %arg1[%83] : memref<24xi32, #tpu.memory_space<smem>>
    %85 = arith.index_cast %84 : i32 to index
    %c0_29 = arith.constant 0 : index
    %86 = vector.load %arg4[%85, %c0_29] : memref<32x10xf32, #tpu.memory_space<vmem>>, vector<1x10xf32>
    %87 = vector.shape_cast %86 : vector<1x10xf32> to vector<10xf32>
    %c3 = arith.constant 3 : index
    %c0_30 = arith.constant 0 : index
    %88 = vector.load %arg7[%c3, %c0_30] : memref<8x10xf32, #tpu.memory_space<vmem>>, vector<1x10xf32>
    %89 = vector.shape_cast %88 : vector<1x10xf32> to vector<10xf32>
    %90 = vector.shape_cast %87 : vector<10xf32> to vector<1x10xf32>
    tpu.vector_store %arg7[%c3, %c0_30], %90 {strides = array<i32>} : memref<8x10xf32, #tpu.memory_space<vmem>>, vector<1x10xf32>,
    %91 = arith.index_cast %82 : i32 to index
    %92 = memref.load %arg2[%91] : memref<24xi32, #tpu.memory_space<smem>>
    %93 = arith.index_cast %92 : i32 to index
    %c0_31 = arith.constant 0 : index
    %94 = vector.load %arg5[%93, %c0_31] : memref<64x11xf32, #tpu.memory_space<vmem>>, vector<1x11xf32>
    %95 = vector.shape_cast %94 : vector<1x11xf32> to vector<11xf32>
    %c3_32 = arith.constant 3 : index
    %c0_33 = arith.constant 0 : index
    %96 = vector.load %arg8[%c3_32, %c0_33] : memref<8x11xf32, #tpu.memory_space<vmem>>, vector<1x11xf32>
    %97 = vector.shape_cast %96 : vector<1x11xf32> to vector<11xf32>
    %98 = vector.shape_cast %95 : vector<11xf32> to vector<1x11xf32>
    tpu.vector_store %arg8[%c3_32, %c0_33], %98 {strides = array<i32>} : memref<8x11xf32, #tpu.memory_space<vmem>>, vector<1x11xf32>,
    %99 = arith.index_cast %82 : i32 to index
    %100 = memref.load %arg3[%99] : memref<24xi32, #tpu.memory_space<smem>>
    %101 = arith.index_cast %100 : i32 to index
    %c0_34 = arith.constant 0 : index
    %102 = vector.load %arg5[%101, %c0_34] : memref<64x11xf32, #tpu.memory_space<vmem>>, vector<1x11xf32>
    %103 = vector.shape_cast %102 : vector<1x11xf32> to vector<11xf32>
    %c3_35 = arith.constant 3 : index
    %c0_36 = arith.constant 0 : index
    %104 = vector.load %arg9[%c3_35, %c0_36] : memref<8x11xf32, #tpu.memory_space<vmem>>, vector<1x11xf32>
    %105 = vector.shape_cast %104 : vector<1x11xf32> to vector<11xf32>
    %106 = vector.shape_cast %103 : vector<11xf32> to vector<1x11xf32>
    tpu.vector_store %arg9[%c3_35, %c0_36], %106 {strides = array<i32>} : memref<8x11xf32, #tpu.memory_space<vmem>>, vector<1x11xf32>,
    %c8_i32_37 = arith.constant 8 : i32
    %107 = arith.muli %arg0, %c8_i32_37 : i32
    %c4_i32 = arith.constant 4 : i32
    %108 = arith.addi %107, %c4_i32 : i32
    %109 = arith.index_cast %108 : i32 to index
    %110 = memref.load %arg1[%109] : memref<24xi32, #tpu.memory_space<smem>>
    %111 = arith.index_cast %110 : i32 to index
    %c0_38 = arith.constant 0 : index
    %112 = vector.load %arg4[%111, %c0_38] : memref<32x10xf32, #tpu.memory_space<vmem>>, vector<1x10xf32>
    %113 = vector.shape_cast %112 : vector<1x10xf32> to vector<10xf32>
    %c4 = arith.constant 4 : index
    %c0_39 = arith.constant 0 : index
    %114 = vector.load %arg7[%c4, %c0_39] : memref<8x10xf32, #tpu.memory_space<vmem>>, vector<1x10xf32>
    %115 = vector.shape_cast %114 : vector<1x10xf32> to vector<10xf32>
    %116 = vector.shape_cast %113 : vector<10xf32> to vector<1x10xf32>
    tpu.vector_store %arg7[%c4, %c0_39], %116 {strides = array<i32>} : memref<8x10xf32, #tpu.memory_space<vmem>>, vector<1x10xf32>,
    %117 = arith.index_cast %108 : i32 to index
    %118 = memref.load %arg2[%117] : memref<24xi32, #tpu.memory_space<smem>>
    %119 = arith.index_cast %118 : i32 to index
    %c0_40 = arith.constant 0 : index
    %120 = vector.load %arg5[%119, %c0_40] : memref<64x11xf32, #tpu.memory_space<vmem>>, vector<1x11xf32>
    %121 = vector.shape_cast %120 : vector<1x11xf32> to vector<11xf32>
    %c4_41 = arith.constant 4 : index
    %c0_42 = arith.constant 0 : index
    %122 = vector.load %arg8[%c4_41, %c0_42] : memref<8x11xf32, #tpu.memory_space<vmem>>, vector<1x11xf32>
    %123 = vector.shape_cast %122 : vector<1x11xf32> to vector<11xf32>
    %124 = vector.shape_cast %121 : vector<11xf32> to vector<1x11xf32>
    tpu.vector_store %arg8[%c4_41, %c0_42], %124 {strides = array<i32>} : memref<8x11xf32, #tpu.memory_space<vmem>>, vector<1x11xf32>,
    %125 = arith.index_cast %108 : i32 to index
    %126 = memref.load %arg3[%125] : memref<24xi32, #tpu.memory_space<smem>>
    %127 = arith.index_cast %126 : i32 to index
    %c0_43 = arith.constant 0 : index
    %128 = vector.load %arg5[%127, %c0_43] : memref<64x11xf32, #tpu.memory_space<vmem>>, vector<1x11xf32>
    %129 = vector.shape_cast %128 : vector<1x11xf32> to vector<11xf32>
    %c4_44 = arith.constant 4 : index
    %c0_45 = arith.constant 0 : index
    %130 = vector.load %arg9[%c4_44, %c0_45] : memref<8x11xf32, #tpu.memory_space<vmem>>, vector<1x11xf32>
    %131 = vector.shape_cast %130 : vector<1x11xf32> to vector<11xf32>
    %132 = vector.shape_cast %129 : vector<11xf32> to vector<1x11xf32>
    tpu.vector_store %arg9[%c4_44, %c0_45], %132 {strides = array<i32>} : memref<8x11xf32, #tpu.memory_space<vmem>>, vector<1x11xf32>,
    %c8_i32_46 = arith.constant 8 : i32
    %133 = arith.muli %arg0, %c8_i32_46 : i32
    %c5_i32 = arith.constant 5 : i32
    %134 = arith.addi %133, %c5_i32 : i32
    %135 = arith.index_cast %134 : i32 to index
    %136 = memref.load %arg1[%135] : memref<24xi32, #tpu.memory_space<smem>>
    %137 = arith.index_cast %136 : i32 to index
    %c0_47 = arith.constant 0 : index
    %138 = vector.load %arg4[%137, %c0_47] : memref<32x10xf32, #tpu.memory_space<vmem>>, vector<1x10xf32>
    %139 = vector.shape_cast %138 : vector<1x10xf32> to vector<10xf32>
    %c5 = arith.constant 5 : index
    %c0_48 = arith.constant 0 : index
    %140 = vector.load %arg7[%c5, %c0_48] : memref<8x10xf32, #tpu.memory_space<vmem>>, vector<1x10xf32>
    %141 = vector.shape_cast %140 : vector<1x10xf32> to vector<10xf32>
    %142 = vector.shape_cast %139 : vector<10xf32> to vector<1x10xf32>
    tpu.vector_store %arg7[%c5, %c0_48], %142 {strides = array<i32>} : memref<8x10xf32, #tpu.memory_space<vmem>>, vector<1x10xf32>,
    %143 = arith.index_cast %134 : i32 to index
    %144 = memref.load %arg2[%143] : memref<24xi32, #tpu.memory_space<smem>>
    %145 = arith.index_cast %144 : i32 to index
    %c0_49 = arith.constant 0 : index
    %146 = vector.load %arg5[%145, %c0_49] : memref<64x11xf32, #tpu.memory_space<vmem>>, vector<1x11xf32>
    %147 = vector.shape_cast %146 : vector<1x11xf32> to vector<11xf32>
    %c5_50 = arith.constant 5 : index
    %c0_51 = arith.constant 0 : index
    %148 = vector.load %arg8[%c5_50, %c0_51] : memref<8x11xf32, #tpu.memory_space<vmem>>, vector<1x11xf32>
    %149 = vector.shape_cast %148 : vector<1x11xf32> to vector<11xf32>
    %150 = vector.shape_cast %147 : vector<11xf32> to vector<1x11xf32>
    tpu.vector_store %arg8[%c5_50, %c0_51], %150 {strides = array<i32>} : memref<8x11xf32, #tpu.memory_space<vmem>>, vector<1x11xf32>,
    %151 = arith.index_cast %134 : i32 to index
    %152 = memref.load %arg3[%151] : memref<24xi32, #tpu.memory_space<smem>>
    %153 = arith.index_cast %152 : i32 to index
    %c0_52 = arith.constant 0 : index
    %154 = vector.load %arg5[%153, %c0_52] : memref<64x11xf32, #tpu.memory_space<vmem>>, vector<1x11xf32>
    %155 = vector.shape_cast %154 : vector<1x11xf32> to vector<11xf32>
    %c5_53 = arith.constant 5 : index
    %c0_54 = arith.constant 0 : index
    %156 = vector.load %arg9[%c5_53, %c0_54] : memref<8x11xf32, #tpu.memory_space<vmem>>, vector<1x11xf32>
    %157 = vector.shape_cast %156 : vector<1x11xf32> to vector<11xf32>
    %158 = vector.shape_cast %155 : vector<11xf32> to vector<1x11xf32>
    tpu.vector_store %arg9[%c5_53, %c0_54], %158 {strides = array<i32>} : memref<8x11xf32, #tpu.memory_space<vmem>>, vector<1x11xf32>,
    %c8_i32_55 = arith.constant 8 : i32
    %159 = arith.muli %arg0, %c8_i32_55 : i32
    %c6_i32 = arith.constant 6 : i32
    %160 = arith.addi %159, %c6_i32 : i32
    %161 = arith.index_cast %160 : i32 to index
    %162 = memref.load %arg1[%161] : memref<24xi32, #tpu.memory_space<smem>>
    %163 = arith.index_cast %162 : i32 to index
    %c0_56 = arith.constant 0 : index
    %164 = vector.load %arg4[%163, %c0_56] : memref<32x10xf32, #tpu.memory_space<vmem>>, vector<1x10xf32>
    %165 = vector.shape_cast %164 : vector<1x10xf32> to vector<10xf32>
    %c6 = arith.constant 6 : index
    %c0_57 = arith.constant 0 : index
    %166 = vector.load %arg7[%c6, %c0_57] : memref<8x10xf32, #tpu.memory_space<vmem>>, vector<1x10xf32>
    %167 = vector.shape_cast %166 : vector<1x10xf32> to vector<10xf32>
    %168 = vector.shape_cast %165 : vector<10xf32> to vector<1x10xf32>
    tpu.vector_store %arg7[%c6, %c0_57], %168 {strides = array<i32>} : memref<8x10xf32, #tpu.memory_space<vmem>>, vector<1x10xf32>,
    %169 = arith.index_cast %160 : i32 to index
    %170 = memref.load %arg2[%169] : memref<24xi32, #tpu.memory_space<smem>>
    %171 = arith.index_cast %170 : i32 to index
    %c0_58 = arith.constant 0 : index
    %172 = vector.load %arg5[%171, %c0_58] : memref<64x11xf32, #tpu.memory_space<vmem>>, vector<1x11xf32>
    %173 = vector.shape_cast %172 : vector<1x11xf32> to vector<11xf32>
    %c6_59 = arith.constant 6 : index
    %c0_60 = arith.constant 0 : index
    %174 = vector.load %arg8[%c6_59, %c0_60] : memref<8x11xf32, #tpu.memory_space<vmem>>, vector<1x11xf32>
    %175 = vector.shape_cast %174 : vector<1x11xf32> to vector<11xf32>
    %176 = vector.shape_cast %173 : vector<11xf32> to vector<1x11xf32>
    tpu.vector_store %arg8[%c6_59, %c0_60], %176 {strides = array<i32>} : memref<8x11xf32, #tpu.memory_space<vmem>>, vector<1x11xf32>,
    %177 = arith.index_cast %160 : i32 to index
    %178 = memref.load %arg3[%177] : memref<24xi32, #tpu.memory_space<smem>>
    %179 = arith.index_cast %178 : i32 to index
    %c0_61 = arith.constant 0 : index
    %180 = vector.load %arg5[%179, %c0_61] : memref<64x11xf32, #tpu.memory_space<vmem>>, vector<1x11xf32>
    %181 = vector.shape_cast %180 : vector<1x11xf32> to vector<11xf32>
    %c6_62 = arith.constant 6 : index
    %c0_63 = arith.constant 0 : index
    %182 = vector.load %arg9[%c6_62, %c0_63] : memref<8x11xf32, #tpu.memory_space<vmem>>, vector<1x11xf32>
    %183 = vector.shape_cast %182 : vector<1x11xf32> to vector<11xf32>
    %184 = vector.shape_cast %181 : vector<11xf32> to vector<1x11xf32>
    tpu.vector_store %arg9[%c6_62, %c0_63], %184 {strides = array<i32>} : memref<8x11xf32, #tpu.memory_space<vmem>>, vector<1x11xf32>,
    %c8_i32_64 = arith.constant 8 : i32
    %185 = arith.muli %arg0, %c8_i32_64 : i32
    %c7_i32 = arith.constant 7 : i32
    %186 = arith.addi %185, %c7_i32 : i32
    %187 = arith.index_cast %186 : i32 to index
    %188 = memref.load %arg1[%187] : memref<24xi32, #tpu.memory_space<smem>>
    %189 = arith.index_cast %188 : i32 to index
    %c0_65 = arith.constant 0 : index
    %190 = vector.load %arg4[%189, %c0_65] : memref<32x10xf32, #tpu.memory_space<vmem>>, vector<1x10xf32>
    %191 = vector.shape_cast %190 : vector<1x10xf32> to vector<10xf32>
    %c7 = arith.constant 7 : index
    %c0_66 = arith.constant 0 : index
    %192 = vector.load %arg7[%c7, %c0_66] : memref<8x10xf32, #tpu.memory_space<vmem>>, vector<1x10xf32>
    %193 = vector.shape_cast %192 : vector<1x10xf32> to vector<10xf32>
    %194 = vector.shape_cast %191 : vector<10xf32> to vector<1x10xf32>
    tpu.vector_store %arg7[%c7, %c0_66], %194 {strides = array<i32>} : memref<8x10xf32, #tpu.memory_space<vmem>>, vector<1x10xf32>,
    %195 = arith.index_cast %186 : i32 to index
    %196 = memref.load %arg2[%195] : memref<24xi32, #tpu.memory_space<smem>>
    %197 = arith.index_cast %196 : i32 to index
    %c0_67 = arith.constant 0 : index
    %198 = vector.load %arg5[%197, %c0_67] : memref<64x11xf32, #tpu.memory_space<vmem>>, vector<1x11xf32>
    %199 = vector.shape_cast %198 : vector<1x11xf32> to vector<11xf32>
    %c7_68 = arith.constant 7 : index
    %c0_69 = arith.constant 0 : index
    %200 = vector.load %arg8[%c7_68, %c0_69] : memref<8x11xf32, #tpu.memory_space<vmem>>, vector<1x11xf32>
    %201 = vector.shape_cast %200 : vector<1x11xf32> to vector<11xf32>
    %202 = vector.shape_cast %199 : vector<11xf32> to vector<1x11xf32>
    tpu.vector_store %arg8[%c7_68, %c0_69], %202 {strides = array<i32>} : memref<8x11xf32, #tpu.memory_space<vmem>>, vector<1x11xf32>,
    %203 = arith.index_cast %186 : i32 to index
    %204 = memref.load %arg3[%203] : memref<24xi32, #tpu.memory_space<smem>>
    %205 = arith.index_cast %204 : i32 to index
    %c0_70 = arith.constant 0 : index
    %206 = vector.load %arg5[%205, %c0_70] : memref<64x11xf32, #tpu.memory_space<vmem>>, vector<1x11xf32>
    %207 = vector.shape_cast %206 : vector<1x11xf32> to vector<11xf32>
    %c7_71 = arith.constant 7 : index
    %c0_72 = arith.constant 0 : index
    %208 = vector.load %arg9[%c7_71, %c0_72] : memref<8x11xf32, #tpu.memory_space<vmem>>, vector<1x11xf32>
    %209 = vector.shape_cast %208 : vector<1x11xf32> to vector<11xf32>
    %210 = vector.shape_cast %207 : vector<11xf32> to vector<1x11xf32>
    tpu.vector_store %arg9[%c7_71, %c0_72], %210 {strides = array<i32>} : memref<8x11xf32, #tpu.memory_space<vmem>>, vector<1x11xf32>,
    %c0_73 = arith.constant 0 : index
    %c0_74 = arith.constant 0 : index
    %211 = vector.load %arg7[%c0_73, %c0_74] : memref<8x10xf32, #tpu.memory_space<vmem>>, vector<8x10xf32>
    %c0_75 = arith.constant 0 : index
    %c0_76 = arith.constant 0 : index
    %212 = vector.load %arg8[%c0_75, %c0_76] : memref<8x11xf32, #tpu.memory_space<vmem>>, vector<8x11xf32>
    %c0_77 = arith.constant 0 : index
    %c0_78 = arith.constant 0 : index
    %213 = vector.load %arg9[%c0_77, %c0_78] : memref<8x11xf32, #tpu.memory_space<vmem>>, vector<8x11xf32>
    %214 = vector.extract_strided_slice %212 {offsets = [0, 0], sizes = [8, 10], strides = [1, 1]} : vector<8x11xf32> to vector<8x10xf32>
    %215 = vector.extract_strided_slice %212 {offsets = [0, 10], sizes = [8, 1], strides = [1, 1]} : vector<8x11xf32> to vector<8x1xf32>
    %216 = vector.extract_strided_slice %213 {offsets = [0, 0], sizes = [8, 10], strides = [1, 1]} : vector<8x11xf32> to vector<8x10xf32>
    %217 = vector.extract_strided_slice %213 {offsets = [0, 10], sizes = [8, 1], strides = [1, 1]} : vector<8x11xf32> to vector<8x1xf32>
    %c8_i32_79 = arith.constant 8 : i32
    %218 = arith.muli %arg0, %c8_i32_79 : i32
    %219 = tpu.iota {dimensions = array<i32: 0>} : vector<8x1xi32>
    %220 = vector.broadcast %218 : i32 to vector<8x1xi32>
    %221 = arith.addi %220, %219 : vector<8x1xi32>
    %c20_i32 = arith.constant 20 : i32
    %222 = vector.broadcast %c20_i32 : i32 to vector<8x1xi32>
    %223 = arith.cmpi slt, %221, %222 : vector<8x1xi32>
    %224 = arith.extui %223 : vector<8x1xi1> to vector<8x1xi32>
    %225 = arith.sitofp %224 : vector<8x1xi32> to vector<8x1xf32>
    %226 = arith.mulf %211, %214 : vector<8x10xf32>
    %cst = arith.constant dense<0.000000e+00> : vector<8xf32>
    %227 = vector.multi_reduction <add>, %226, %cst [1] : vector<8x10xf32> to vector<8xf32>
    %228 = vector.shape_cast %227 : vector<8xf32> to vector<8x1xf32>
    %229 = arith.addf %228, %215 : vector<8x1xf32>
    %230 = arith.mulf %211, %216 : vector<8x10xf32>
    %cst_80 = arith.constant dense<0.000000e+00> : vector<8xf32>
    %231 = vector.multi_reduction <add>, %230, %cst_80 [1] : vector<8x10xf32> to vector<8xf32>
    %232 = vector.shape_cast %231 : vector<8xf32> to vector<8x1xf32>
    %233 = arith.addf %232, %217 : vector<8x1xf32>
    %234 = arith.subf %229, %233 : vector<8x1xf32>
    %235 = math.absf %234 : vector<8x1xf32>
    %cst_81 = arith.constant 0.000000e+00 : f32
    %236 = vector.broadcast %cst_81 : f32 to vector<8x1xf32>
    %237 = arith.subf %236, %235 : vector<8x1xf32>
    %238 = math.exp %237 : vector<8x1xf32>
    %cst_82 = arith.constant 0.000000e+00 : f32
    %239 = vector.broadcast %cst_82 : f32 to vector<8x1xf32>
    %240 = arith.cmpf oge, %234, %239 : vector<8x1xf32>
    %cst_83 = arith.constant 1.000000e+00 : f32
    %241 = vector.broadcast %cst_83 : f32 to vector<8x1xf32>
    %242 = arith.addf %241, %238 : vector<8x1xf32>
    %cst_84 = arith.constant 1.000000e+00 : f32
    %243 = vector.broadcast %cst_84 : f32 to vector<8x1xf32>
    %244 = arith.divf %243, %242 : vector<8x1xf32>
    %cst_85 = arith.constant 1.000000e+00 : f32
    %245 = vector.broadcast %cst_85 : f32 to vector<8x1xf32>
    %246 = arith.addf %245, %238 : vector<8x1xf32>
    %247 = arith.divf %238, %246 : vector<8x1xf32>
    %248 = arith.select %240, %244, %247 : vector<8x1xi1>, vector<8x1xf32>
    %cst_86 = arith.constant 1.000000e-10 : f32
    %249 = vector.broadcast %cst_86 : f32 to vector<8x1xf32>
    %250 = arith.addf %248, %249 : vector<8x1xf32>
    %251 = math.log %250 : vector<8x1xf32>
    %cst_87 = arith.constant 0.000000e+00 : f32
    %252 = vector.broadcast %cst_87 : f32 to vector<8x1xf32>
    %253 = arith.subf %252, %251 : vector<8x1xf32>
    %c0_88 = arith.constant 0 : index
    %254 = memref.load %arg10[%c0_88] : memref<4xf32, #tpu.memory_space<smem>>
    %255 = arith.mulf %253, %225 : vector<8x1xf32>
    %256 = vector.shape_cast %255 : vector<8x1xf32> to vector<1x8x1xf32>
    %cst_89 = arith.constant dense<0.000000e+00> : vector<1xf32>
    %257 = vector.multi_reduction <add>, %256, %cst_89 [1, 2] : vector<1x8x1xf32> to vector<1xf32>
    %258 = vector.shape_cast %257 : vector<1xf32> to vector<1x1x1xf32>
    %259 = vector.extract %258[0, 0, 0] : f32 from vector<1x1x1xf32>
    %260 = arith.addf %254, %259 : f32
    %c0_90 = arith.constant 0 : index
    %261 = memref.load %arg10[%c0_90] : memref<4xf32, #tpu.memory_space<smem>>
    memref.store %260, %arg10[%c0_90] : memref<4xf32, #tpu.memory_space<smem>>
    %c1_91 = arith.constant 1 : index
    %262 = memref.load %arg10[%c1_91] : memref<4xf32, #tpu.memory_space<smem>>
    %263 = arith.mulf %215, %215 : vector<8x1xf32>
    %264 = arith.mulf %263, %225 : vector<8x1xf32>
    %265 = vector.shape_cast %264 : vector<8x1xf32> to vector<1x8x1xf32>
    %cst_92 = arith.constant dense<0.000000e+00> : vector<1xf32>
    %266 = vector.multi_reduction <add>, %265, %cst_92 [1, 2] : vector<1x8x1xf32> to vector<1xf32>
    %267 = vector.shape_cast %266 : vector<1xf32> to vector<1x1x1xf32>
    %268 = vector.extract %267[0, 0, 0] : f32 from vector<1x1x1xf32>
    %269 = arith.addf %262, %268 : f32
    %c1_93 = arith.constant 1 : index
    %270 = memref.load %arg10[%c1_93] : memref<4xf32, #tpu.memory_space<smem>>
    memref.store %269, %arg10[%c1_93] : memref<4xf32, #tpu.memory_space<smem>>
    %c2_94 = arith.constant 2 : index
    %271 = memref.load %arg10[%c2_94] : memref<4xf32, #tpu.memory_space<smem>>
    %272 = arith.mulf %217, %217 : vector<8x1xf32>
    %273 = arith.mulf %272, %225 : vector<8x1xf32>
    %274 = vector.shape_cast %273 : vector<8x1xf32> to vector<1x8x1xf32>
    %cst_95 = arith.constant dense<0.000000e+00> : vector<1xf32>
    %275 = vector.multi_reduction <add>, %274, %cst_95 [1, 2] : vector<1x8x1xf32> to vector<1xf32>
    %276 = vector.shape_cast %275 : vector<1xf32> to vector<1x1x1xf32>
    %277 = vector.extract %276[0, 0, 0] : f32 from vector<1x1x1xf32>
    %278 = arith.addf %271, %277 : f32
    %c2_96 = arith.constant 2 : index
    %279 = memref.load %arg10[%c2_96] : memref<4xf32, #tpu.memory_space<smem>>
    memref.store %278, %arg10[%c2_96] : memref<4xf32, #tpu.memory_space<smem>>
    %c3_97 = arith.constant 3 : index
    %280 = memref.load %arg10[%c3_97] : memref<4xf32, #tpu.memory_space<smem>>
    %281 = arith.mulf %211, %211 : vector<8x10xf32>
    %282 = arith.mulf %214, %214 : vector<8x10xf32>
    %283 = arith.addf %281, %282 : vector<8x10xf32>
    %284 = arith.mulf %216, %216 : vector<8x10xf32>
    %285 = arith.addf %283, %284 : vector<8x10xf32>
    %286 = vector.broadcast %225 : vector<8x1xf32> to vector<8x10xf32>
    %287 = arith.mulf %285, %286 : vector<8x10xf32>
    %288 = vector.shape_cast %287 : vector<8x10xf32> to vector<1x8x10xf32>
    %cst_98 = arith.constant dense<0.000000e+00> : vector<1xf32>
    %289 = vector.multi_reduction <add>, %288, %cst_98 [1, 2] : vector<1x8x10xf32> to vector<1xf32>
    %290 = vector.shape_cast %289 : vector<1xf32> to vector<1x1x1xf32>
    %291 = vector.extract %290[0, 0, 0] : f32 from vector<1x1x1xf32>
    %292 = arith.addf %280, %291 : f32
    %c3_99 = arith.constant 3 : index
    %293 = memref.load %arg10[%c3_99] : memref<4xf32, #tpu.memory_space<smem>>
    memref.store %292, %arg10[%c3_99] : memref<4xf32, #tpu.memory_space<smem>>
    %c2_i32_100 = arith.constant 2 : i32
    %294 = arith.cmpi eq, %arg0, %c2_i32_100 : i32
    %295 = arith.extui %294 : i1 to i32
    %c0_i32_101 = arith.constant 0 : i32
    %296 = arith.cmpi ne, %295, %c0_i32_101 : i32
    scf.if %296 {
      %c0_102 = arith.constant 0 : index
      %297 = memref.load %arg10[%c0_102] : memref<4xf32, #tpu.memory_space<smem>>
      %cst_103 = arith.constant 5.000000e-02 : f32
      %298 = arith.mulf %297, %cst_103 : f32
      %c1_104 = arith.constant 1 : index
      %299 = memref.load %arg10[%c1_104] : memref<4xf32, #tpu.memory_space<smem>>
      %300 = math.sqrt %299 : f32
      %c2_105 = arith.constant 2 : index
      %301 = memref.load %arg10[%c2_105] : memref<4xf32, #tpu.memory_space<smem>>
      %302 = math.sqrt %301 : f32
      %303 = arith.addf %300, %302 : f32
      %cst_106 = arith.constant 6.500000e-05 : f32
      %304 = arith.mulf %cst_106, %303 : f32
      %c3_107 = arith.constant 3 : index
      %305 = memref.load %arg10[%c3_107] : memref<4xf32, #tpu.memory_space<smem>>
      %cst_108 = arith.constant 1.800000e-04 : f32
      %306 = arith.mulf %cst_108, %305 : f32
      %307 = arith.addf %304, %306 : f32
      %308 = arith.addf %298, %307 : f32
      %c0_109 = arith.constant 0 : index
      %c0_110 = arith.constant 0 : index
      %309 = memref.load %arg6[%c0_109, %c0_110] : memref<1x1xf32, #tpu.memory_space<smem>>
      memref.store %308, %arg6[%c0_109, %c0_110] : memref<1x1xf32, #tpu.memory_space<smem>>
    } else {
    }
    return
  }
  func.func @transform_0(%arg0: i32, %arg1: memref<24xi32, #tpu.memory_space<smem>>, %arg2: memref<24xi32, #tpu.memory_space<smem>>, %arg3: memref<24xi32, #tpu.memory_space<smem>>) -> (i32, i32) {
    %c0_i32 = arith.constant 0 : i32
    %c0_i32_0 = arith.constant 0 : i32
    %c0_i32_1 = arith.constant 0 : i32
    return %c0_i32, %c0_i32_0 : i32, i32
  }
  func.func @transform_1(%arg0: i32, %arg1: memref<24xi32, #tpu.memory_space<smem>>, %arg2: memref<24xi32, #tpu.memory_space<smem>>, %arg3: memref<24xi32, #tpu.memory_space<smem>>) -> (i32, i32) {
    %c0_i32 = arith.constant 0 : i32
    %c0_i32_0 = arith.constant 0 : i32
    %c0_i32_1 = arith.constant 0 : i32
    return %c0_i32, %c0_i32_0 : i32, i32
  }
  func.func @transform_2(%arg0: i32, %arg1: memref<24xi32, #tpu.memory_space<smem>>, %arg2: memref<24xi32, #tpu.memory_space<smem>>, %arg3: memref<24xi32, #tpu.memory_space<smem>>) -> (i32, i32) {
    %c0_i32 = arith.constant 0 : i32
    %c0_i32_0 = arith.constant 0 : i32
    %c0_i32_1 = arith.constant 0 : i32
    return %c0_i32, %c0_i32_0 : i32, i32
  }
}

</mosaic_0001>

<llo_original>
// kernel: tpu_custom_call.1
$region0: #{tpu_custom_call.1}
  #allocation0 [shape = 'u32[]', space=smem, size = 0x4, offset = 0x4, fixed_abs, tag = 'smem constant byte address 0x4 - core index']
  #allocation1 [shape = 'u32[144,128]{1,0:T(1,128)}', space=vmem, size = 0x12000, scoped, tag = 'internal scratch']
  #allocation2 [shape = 'f32[8,10]{1,0:T(8,128)}', space=vmem, size = 0x1000, scoped, tag = 'scratch operand']
  #allocation3 [shape = 'f32[8,11]{1,0:T(8,128)}', space=vmem, size = 0x1000, scoped, tag = 'scratch operand']
  #allocation4 [shape = 'f32[8,11]{1,0:T(8,128)}', space=vmem, size = 0x1000, scoped, tag = 'scratch operand']
  #allocation5 [shape = 'f32[4]{0:T(128)}', space=smem, size = 0x200, scoped, tag = 'scratch operand']
  #allocation6 [shape = 's32[1]{0}', space=sflag, size = 0x4, scoped, tag = 'scoped memory for tpu_custom_call.1']
  #allocation7 [shape = 'u8[512]{0}', space=smem, size = 0x200, scoped, tag = 'prefetched SMEM operand 0']
  #allocation8 [shape = 'u8[512]{0}', space=smem, size = 0x200, scoped, tag = 'prefetched SMEM operand 1']
  #allocation9 [shape = 'u8[512]{0}', space=smem, size = 0x200, scoped, tag = 'prefetched SMEM operand 2']
  %s0 = inlined_call_operand.vmem [shape: s32[24], index: 0, kind: input, shape index: {}]
  %s1 = inlined_call_operand.vmem [shape: s32[24], index: 1, kind: input, shape index: {}]
  %s2 = inlined_call_operand.vmem [shape: s32[24], index: 2, kind: input, shape index: {}]
  %s3 = inlined_call_operand.vmem [shape: f32[32,10], index: 3, kind: input, shape index: {}]
  %s4 = inlined_call_operand.vmem [shape: f32[64,11], index: 4, kind: input, shape index: {}]
  %s5 = inlined_call_operand.hbm [shape: f32[1,1], index: 5, kind: output, shape index: {}]
  %s6 = sld [smem:[#allocation0]]
  $region49: #{tpu_custom_call.1} parent=0
    _
  %s8 = ssub.s32 1, %s6
  %s9 = scalar_select 0, %s8, %s6
  %s10 = sshll.u32 %s0, 4
  %s11 = int_to_ptr.vmem [resolvable:$true] %s10
  %13 = dma.vmem_to_smem %s11, 16, [#allocation7], [#allocation6]
  %s14 = sshll.u32 %s1, 4
  %s15 = int_to_ptr.vmem [resolvable:$true] %s14
  %17 = dma.vmem_to_smem %s15, 16, [#allocation8], [#allocation6]
  %s18 = sshll.u32 %s2, 4
  %s19 = int_to_ptr.vmem [resolvable:$true] %s18
  %21 = dma.vmem_to_smem %s19, 16, [#allocation9], [#allocation6]
  %22 = dma.done [#allocation6], 48
  %23 = sfence
  $region1: #{tpu_custom_call.1} parent=0
    #allocation10 [shape = 'u8[512]{0}', space=smem, size = 0x200, scoped, tag = 'output window, operand 0, single buffered']
    #allocation11 [shape = 's32[2]{0}', space=sflag, size = 0x8, scoped, tag = 'scoped memory for tpu_custom_call.1']
    %24 = vsyncpa [#allocation11], 0
    loop: start=0, step=1, limit=5
    $region2: #{tpu_custom_call.1} parent=1 // loop_pre_header
      _
    $region3: #{tpu_custom_call.1} parent=1 // loop_header
      %s26 = sphi 0, %s30
      %p27 = scmp.ge.s32.totalorder %s26, 5
      %s34 = sphi 0, %s34
      %s36 = sphi 0, %s34
      %s37 = sphi 0, %s36
      %s51 = sphi 0, %s37
      %s55 = sphi 0, %s55
      %s57 = sphi 0, %s55
      %s58 = sphi 0, %s57
      %s72 = sphi 0, %s58
      %s76 = sphi 0, %s76
      %s78 = sphi 0, %s76
      %s79 = sphi 0, %s78
      %s93 = sphi 0, %s79
    $region4: #{tpu_custom_call.1} parent=1 // loop_header_branch
      %29 = sbr.rel (%p27) target = $region8
    $region5: #{tpu_custom_call.1} parent=1 // loop_body
      %s31 = ssub.s32 %s26, 1
      %s32 = ssub.s32 %s26, 2
      %s33 = sadd.s32 %s26, 1
      %s35 = sadd.s32 %s34, 1
      %p38 = scmp.eq.s32.totalorder %s26, 2
      %p39 = scmp.ne.s32.totalorder %s34, %s36
      %p40 = scmp.eq.s32.totalorder %s26, 0
      %p41 = por %p39, %p40
      %p42 = scmp.ne.s32.totalorder %s34, %s36
      %p43 = scmp.eq.s32.totalorder %s31, 2
      %p44 = por %p42, %p43
      %p45 = scmp.ne.s32.totalorder %s36, %s37
      %p46 = scmp.eq.s32.totalorder %s31, 0
      %p47 = por %p45, %p46
      %p48 = scmp.ne.s32.totalorder %s36, %s37
      %p49 = scmp.eq.s32.totalorder %s32, 2
      %p50 = por %p48, %p49
      %p52 = scmp.ne.s32.totalorder %s37, %s51
      %p53 = scmp.eq.s32.totalorder %s32, 0
      %p54 = por %p52, %p53
      %s56 = sadd.s32 %s55, 1
      %p59 = scmp.eq.s32.totalorder %s26, 2
      %p60 = scmp.ne.s32.totalorder %s55, %s57
      %p61 = scmp.eq.s32.totalorder %s26, 0
      %p62 = por %p60, %p61
      %p63 = scmp.ne.s32.totalorder %s55, %s57
      %p64 = scmp.eq.s32.totalorder %s31, 2
      %p65 = por %p63, %p64
      %p66 = scmp.ne.s32.totalorder %s57, %s58
      %p67 = scmp.eq.s32.totalorder %s31, 0
      %p68 = por %p66, %p67
      %p69 = scmp.ne.s32.totalorder %s57, %s58
      %p70 = scmp.eq.s32.totalorder %s32, 2
      %p71 = por %p69, %p70
      %p73 = scmp.ne.s32.totalorder %s58, %s72
      %p74 = scmp.eq.s32.totalorder %s32, 0
      %p75 = por %p73, %p74
      %s77 = sadd.s32 %s76, 1
      %p80 = scmp.eq.s32.totalorder %s26, 2
      %p81 = scmp.ne.s32.totalorder %s76, %s78
      %p82 = scmp.eq.s32.totalorder %s26, 0
      %p83 = por %p81, %p82
      %p84 = scmp.ne.s32.totalorder %s76, %s78
      %p85 = scmp.eq.s32.totalorder %s31, 2
      %p86 = por %p84, %p85
      %p87 = scmp.ne.s32.totalorder %s78, %s79
      %p88 = scmp.eq.s32.totalorder %s31, 0
      %p89 = por %p87, %p88
      %p90 = scmp.ne.s32.totalorder %s78, %s79
      %p91 = scmp.eq.s32.totalorder %s32, 2
      %p92 = por %p90, %p91
      %p94 = scmp.ne.s32.totalorder %s79, %s93
      %p95 = scmp.eq.s32.totalorder %s32, 0
      %p96 = por %p94, %p95
      %p97 = scmp.le.s32.totalorder 1, %s26
      %p98 = scmp.lt.s32.totalorder %s26, 4
      %p99 = pnand %p97, %p98
      %p100 = pneg %p99
      // Predicated region
      $region9: #{tpu_custom_call.1} parent=5 // pred_check
        _
      $region10: #{tpu_custom_call.1} parent=5 // pred_check_branch
        %102 = sbr.rel (%p99) target = $region12
      $region11: #{tpu_custom_call.1} parent=5 // pred_region
        %s103 = ssub.s32 %s26, 1
        // Predicated region
        $region13: #{tpu_custom_call.1} parent=11 // pred_check
          %p104 = pneg %p47
        $region14: #{tpu_custom_call.1} parent=11 // pred_check_branch
          %106 = sbr.rel (%p104) target = $region16
        $region15: #{tpu_custom_call.1} parent=11 // pred_region
          _
        $region16: #{tpu_custom_call.1} parent=11 // pred_fallthru
          _
        // Predicated region
        $region17: #{tpu_custom_call.1} parent=11 // pred_check
          %p107 = pneg %p68
        $region18: #{tpu_custom_call.1} parent=11 // pred_check_branch
          %109 = sbr.rel (%p107) target = $region20
        $region19: #{tpu_custom_call.1} parent=11 // pred_region
          _
        $region20: #{tpu_custom_call.1} parent=11 // pred_fallthru
          _
      $region12: #{tpu_custom_call.1} parent=5 // pred_fallthru
        _
      %p110 = scmp.lt.s32.totalorder %s26, 3
      // Predicated region
      $region21: #{tpu_custom_call.1} parent=5 // pred_check
        %p111 = pneg %p110
      $region22: #{tpu_custom_call.1} parent=5 // pred_check_branch
        %113 = sbr.rel (%p111) target = $region24
      $region23: #{tpu_custom_call.1} parent=5 // pred_region
        _
      $region24: #{tpu_custom_call.1} parent=5 // pred_fallthru
        _
      %p114 = scmp.le.s32.totalorder 1, %s26
      %p115 = scmp.lt.s32.totalorder %s26, 4
      %p116 = pnand %p114, %p115
      %p117 = pneg %p116
      // Predicated region
      $region25: #{tpu_custom_call.1} parent=5 // pred_check
        _
      $region26: #{tpu_custom_call.1} parent=5 // pred_check_branch
        %119 = sbr.rel (%p116) target = $region28
      $region27: #{tpu_custom_call.1} parent=5 // pred_region
        %s120 = ssub.s32 %s26, 1
        %p121 = pneg %p47
        %p122 = pneg %p44
        %p123 = pneg %p68
        %p124 = pneg %p65
        %p125 = pneg %p89
        %p126 = pneg %p86
        %p127 = scmp.eq.s32.totalorder %s31, 0
        // Predicated region
        $region29: #{tpu_custom_call.1} parent=27 // pred_check
          %p128 = pneg %p127
        $region30: #{tpu_custom_call.1} parent=27 // pred_check_branch
          %130 = sbr.rel (%p128) target = $region32
        $region31: #{tpu_custom_call.1} parent=27 // pred_region
          %s131 = scalar_lea.smem [#allocation5], 0
          %132 = sst [smem:[%s131]] 0.0
          %s133 = scalar_lea.smem [#allocation5], 1
          %134 = sst [smem:[%s133]] 0.0
          %s135 = scalar_lea.smem [#allocation5], 2
          %136 = sst [smem:[%s135]] 0.0
          %s137 = scalar_lea.smem [#allocation5], 3
          %138 = sst [smem:[%s137]] 0.0
        $region32: #{tpu_custom_call.1} parent=27 // pred_fallthru
          _
        %s139 = smul.u32 %s31, 8
        %s140 = sld [smem:[#allocation7 + %s139]]
        %s141 = scalar_lea.vmem %s3, %s140
        %v142 = vld [vmem:[%s141] sm:$0x1]
        %vm143 = vcmask 73728
        %144 = vst.msk [vmem:[#allocation2] sm:$0x1] %vm143, %v142
        %s145 = sld [smem:[#allocation8 + %s139]]
        %s146 = scalar_lea.vmem %s4, %s145
        %v147 = vld [vmem:[%s146] sm:$0x1]
        %vm148 = vcmask 81920
        %149 = vst.msk [vmem:[#allocation3] sm:$0x1] %vm148, %v147
        %s150 = sld [smem:[#allocation9 + %s139]]
        %s151 = scalar_lea.vmem %s4, %s150
        %v152 = vld [vmem:[%s151] sm:$0x1]
        %153 = vst.msk [vmem:[#allocation4] sm:$0x1] %vm148, %v152
        %s154 = sadd.s32 %s139, 1
        %s155 = sld [smem:[#allocation7 + %s154]]
        %s156 = scalar_lea.vmem %s3, %s155
        %v157 = vld [vmem:[%s156] sm:$0x1]
        %158 = vst.msk [vmem:[#allocation2 + $0x1] sm:$0x1] %vm143, %v157
        %s159 = sld [smem:[#allocation8 + %s154]]
        %s160 = scalar_lea.vmem %s4, %s159
        %v161 = vld [vmem:[%s160] sm:$0x1]
        %162 = vst.msk [vmem:[#allocation3 + $0x1] sm:$0x1] %vm148, %v161
        %s163 = sld [smem:[#allocation9 + %s154]]
        %s164 = scalar_lea.vmem %s4, %s163
        %v165 = vld [vmem:[%s164] sm:$0x1]
        %166 = vst.msk [vmem:[#allocation4 + $0x1] sm:$0x1] %vm148, %v165
        %s167 = sadd.s32 %s139, 2
        %s168 = sld [smem:[#allocation7 + %s167]]
        %s169 = scalar_lea.vmem %s3, %s168
        %v170 = vld [vmem:[%s169] sm:$0x1]
        %171 = vst.msk [vmem:[#allocation2 + $0x2] sm:$0x1] %vm143, %v170
        %s172 = sld [smem:[#allocation8 + %s167]]
        %s173 = scalar_lea.vmem %s4, %s172
        %v174 = vld [vmem:[%s173] sm:$0x1]
        %175 = vst.msk [vmem:[#allocation3 + $0x2] sm:$0x1] %vm148, %v174
        %s176 = sld [smem:[#allocation9 + %s167]]
        %s177 = scalar_lea.vmem %s4, %s176
        %v178 = vld [vmem:[%s177] sm:$0x1]
        %179 = vst.msk [vmem:[#allocation4 + $0x2] sm:$0x1] %vm148, %v178
        %s180 = sadd.s32 %s139, 3
        %s181 = sld [smem:[#allocation7 + %s180]]
        %s182 = scalar_lea.vmem %s3, %s181
        %v183 = vld [vmem:[%s182] sm:$0x1]
        %184 = vst.msk [vmem:[#allocation2 + $0x3] sm:$0x1] %vm143, %v183
        %s185 = sld [smem:[#allocation8 + %s180]]
        %s186 = scalar_lea.vmem %s4, %s185
        %v187 = vld [vmem:[%s186] sm:$0x1]
        %188 = vst.msk [vmem:[#allocation3 + $0x3] sm:$0x1] %vm148, %v187
        %s189 = sld [smem:[#allocation9 + %s180]]
        %s190 = scalar_lea.vmem %s4, %s189
        %v191 = vld [vmem:[%s190] sm:$0x1]
        %192 = vst.msk [vmem:[#allocation4 + $0x3] sm:$0x1] %vm148, %v191
        %s193 = sadd.s32 %s139, 4
        %s194 = sld [smem:[#allocation7 + %s193]]
        %s195 = scalar_lea.vmem %s3, %s194
        %v196 = vld [vmem:[%s195] sm:$0x1]
        %197 = vst.msk [vmem:[#allocation2 + $0x4] sm:$0x1] %vm143, %v196
        %s198 = sld [smem:[#allocation8 + %s193]]
        %s199 = scalar_lea.vmem %s4, %s198
        %v200 = vld [vmem:[%s199] sm:$0x1]
        %201 = vst.msk [vmem:[#allocation3 + $0x4] sm:$0x1] %vm148, %v200
        %s202 = sld [smem:[#allocation9 + %s193]]
        %s203 = scalar_lea.vmem %s4, %s202
        %v204 = vld [vmem:[%s203] sm:$0x1]
        %205 = vst.msk [vmem:[#allocation4 + $0x4] sm:$0x1] %vm148, %v204
        %s206 = sadd.s32 %s139, 5
        %s207 = sld [smem:[#allocation7 + %s206]]
        %s208 = scalar_lea.vmem %s3, %s207
        %v209 = vld [vmem:[%s208] sm:$0x1]
        %210 = vst.msk [vmem:[#allocation2 + $0x5] sm:$0x1] %vm143, %v209
        %s211 = sld [smem:[#allocation8 + %s206]]
        %s212 = scalar_lea.vmem %s4, %s211
        %v213 = vld [vmem:[%s212] sm:$0x1]
        %214 = vst.msk [vmem:[#allocation3 + $0x5] sm:$0x1] %vm148, %v213
        %s215 = sld [smem:[#allocation9 + %s206]]
        %s216 = scalar_lea.vmem %s4, %s215
        %v217 = vld [vmem:[%s216] sm:$0x1]
        %218 = vst.msk [vmem:[#allocation4 + $0x5] sm:$0x1] %vm148, %v217
        %s219 = sadd.s32 %s139, 6
        %s220 = sld [smem:[#allocation7 + %s219]]
        %s221 = scalar_lea.vmem %s3, %s220
        %v222 = vld [vmem:[%s221] sm:$0x1]
        %223 = vst.msk [vmem:[#allocation2 + $0x6] sm:$0x1] %vm143, %v222
        %s224 = sld [smem:[#allocation8 + %s219]]
        %s225 = scalar_lea.vmem %s4, %s224
        %v226 = vld [vmem:[%s225] sm:$0x1]
        %227 = vst.msk [vmem:[#allocation3 + $0x6] sm:$0x1] %vm148, %v226
        %s228 = sld [smem:[#allocation9 + %s219]]
        %s229 = scalar_lea.vmem %s4, %s228
        %v230 = vld [vmem:[%s229] sm:$0x1]
        %231 = vst.msk [vmem:[#allocation4 + $0x6] sm:$0x1] %vm148, %v230
        %s232 = sadd.s32 %s139, 7
        %s233 = sld [smem:[#allocation7 + %s232]]
        %s234 = scalar_lea.vmem %s3, %s233
        %v235 = vld [vmem:[%s234] sm:$0x1]
        %236 = vst.msk [vmem:[#allocation2 + $0x7] sm:$0x1] %vm143, %v235
        %s237 = sld [smem:[#allocation8 + %s232]]
        %s238 = scalar_lea.vmem %s4, %s237
        %v239 = vld [vmem:[%s238] sm:$0x1]
        %240 = vst.msk [vmem:[#allocation3 + $0x7] sm:$0x1] %vm148, %v239
        %s241 = sld [smem:[#allocation9 + %s232]]
        %s242 = scalar_lea.vmem %s4, %s241
        %v243 = vld [vmem:[%s242] sm:$0x1]
        %244 = vst.msk [vmem:[#allocation4 + $0x7] sm:$0x1] %vm148, %v243
        %v245 = vld [vmem:[#allocation2] sm:$0xff]
        %v246 = vld [vmem:[#allocation3] sm:$0xff]
        %v247 = vld [vmem:[#allocation4] sm:$0xff]
        %v248 = vlaneseq
        %v249 = vshrl.u32 %v248, 7
        %v250 = vstv %s139
        %v251 = vadd.s32 %v250, %v249
        %vm252 = vcmp.lt.s32.totalorder %v251, 20
        %v253 = vsel %vm252, 1, 0
        %v254 = vcvt.s32.f32 %v253
        %v255 = vmul.f32 %v245, %v246
        %vm256 = vcmask 80896
        %v257 = vsel %vm256, %v255, 0.0
        %258 = vadd.xlane.f32.xlu0 %v257
        %v259 = vpop.xlane.xlu0 %258
        %v260 = vadd.f32 %v259, %v246
        %v261 = vmul.f32 %v245, %v247
        %v262 = vsel %vm256, %v261, 0.0
        %263 = vadd.xlane.f32.xlu0 %v262
        %v264 = vpop.xlane.xlu0 %263
        %v265 = vadd.f32 %v264, %v247
        %v266 = vsub.f32 %v260, %v265
        %v267 = vand.u32 2147483647, %v266
        %v268 = vsub.f32 0.0, %v267
        %v269 = vmul.f32 %v268, 1.442695
        %v270 = vpow.pop %v269
        %vm271 = vcmp.ge.f32.partialorder %v266, 0.0
        %v272 = vadd.f32 %v270, 1.0
        %v273 = vrcp.pop %v272
        %v274 = vmul.f32 1.0, %v273
        %v275 = vmul.f32 %v270, %v273
        %v276 = vsel %vm271, %v274, %v275
        %v277 = vadd.f32 %v276, 1e-10
        %v278 = vlog2.pop %v277
        %v279 = vmul.f32 %v278, 0.6931472
        %v280 = vsub.f32 0.0, %v279
        %s281 = sld [smem:[#allocation5]]
        %v282 = vmul.f32 %v280, %v254
        %284 = vrot.lane.b32.xlu0 %v282, 118
        %v285 = vpop.permute.xlu0 %284
        %vm287 = vcmask 7168
        %v288 = vsel %vm287, %v285, 0.0
        %289 = vadd.xlane.f32.xlu0 %v288
        %v290 = vpop.xlane.xlu0 %289
        %v291 = vrot.slane %v290, 4
        %v292 = vadd.f32 %v290, %v291
        %v293 = vrot.slane %v292, 2
        %v294 = vadd.f32 %v292, %v293
        %v295 = vrot.slane %v294, 1
        %v296 = vadd.f32 %v294, %v295
        %s297 = vtos %v296
        %s298 = sadd.f32 %s281, %s297
        %s299 = scalar_lea.smem [#allocation5], 0
        %300 = sst [smem:[%s299]] %s298
        %s301 = sld [smem:[#allocation5 + $0x1]]
        %v302 = vmul.f32 %v246, %v246
        %v303 = vmul.f32 %v302, %v254
        %305 = vrot.lane.b32.xlu0 %v303, 118
        %v306 = vpop.permute.xlu0 %305
        %v308 = vsel %vm287, %v306, 0.0
        %309 = vadd.xlane.f32.xlu0 %v308
        %v310 = vpop.xlane.xlu0 %309
        %v311 = vrot.slane %v310, 4
        %v312 = vadd.f32 %v310, %v311
        %v313 = vrot.slane %v312, 2
        %v314 = vadd.f32 %v312, %v313
        %v315 = vrot.slane %v314, 1
        %v316 = vadd.f32 %v314, %v315
        %s317 = vtos %v316
        %s318 = sadd.f32 %s301, %s317
        %s319 = scalar_lea.smem [#allocation5], 1
        %320 = sst [smem:[%s319]] %s318
        %s321 = sld [smem:[#allocation5 + $0x2]]
        %v322 = vmul.f32 %v247, %v247
        %v323 = vmul.f32 %v322, %v254
        %325 = vrot.lane.b32.xlu0 %v323, 118
        %v326 = vpop.permute.xlu0 %325
        %v328 = vsel %vm287, %v326, 0.0
        %329 = vadd.xlane.f32.xlu0 %v328
        %v330 = vpop.xlane.xlu0 %329
        %v331 = vrot.slane %v330, 4
        %v332 = vadd.f32 %v330, %v331
        %v333 = vrot.slane %v332, 2
        %v334 = vadd.f32 %v332, %v333
        %v335 = vrot.slane %v334, 1
        %v336 = vadd.f32 %v334, %v335
        %s337 = vtos %v336
        %s338 = sadd.f32 %s321, %s337
        %s339 = scalar_lea.smem [#allocation5], 2
        %340 = sst [smem:[%s339]] %s338
        %s341 = sld [smem:[#allocation5 + $0x3]]
        %v342 = vmul.f32 %v245, %v245
        %v343 = vadd.f32 %v342, %v302
        %v344 = vadd.f32 %v343, %v322
        %v345 = vmul.f32 %v344, %v254
        %v346 = vsel %vm256, %v345, 0.0
        %347 = vadd.xlane.f32.xlu0 %v346
        %v348 = vpop.xlane.xlu0 %347
        %v349 = vrot.slane %v348, 4
        %v350 = vadd.f32 %v348, %v349
        %v351 = vrot.slane %v350, 2
        %v352 = vadd.f32 %v350, %v351
        %v353 = vrot.slane %v352, 1
        %v354 = vadd.f32 %v352, %v353
        %s355 = vtos %v354
        %s356 = sadd.f32 %s341, %s355
        %s357 = scalar_lea.smem [#allocation5], 3
        %358 = sst [smem:[%s357]] %s356
        %p359 = scmp.eq.s32.totalorder %s31, 2
        // Predicated region
        $region33: #{tpu_custom_call.1} parent=27 // pred_check
          %p360 = pneg %p359
        $region34: #{tpu_custom_call.1} parent=27 // pred_check_branch
          %362 = sbr.rel (%p360) target = $region36
        $region35: #{tpu_custom_call.1} parent=27 // pred_region
          %s363 = sld [smem:[#allocation5]]
          %s364 = smul.f32 %s363, 0.05
          %s365 = sld [smem:[#allocation5 + $0x1]]
          %v366 = vstv %s365
          %v367 = vrsqrt.pop %v366
          %v368 = vmul.f32 %v366, %v367
          %vm369 = vcmp.eq.f32.partialorder %v366, inf
          %v370 = vsel %vm369, %v366, %v368
          %vm371 = vcmp.eq.f32.partialorder %v366, 0.0
          %v372 = vand.u32 %v366, 2147483648
          %v373 = vsel %vm371, %v372, %v370
          %s374 = vtos %v373
          %s375 = sld [smem:[#allocation5 + $0x2]]
          %v376 = vstv %s375
          %v377 = vrsqrt.pop %v376
          %v378 = vmul.f32 %v376, %v377
          %vm379 = vcmp.eq.f32.partialorder %v376, inf
          %v380 = vsel %vm379, %v376, %v378
          %vm381 = vcmp.eq.f32.partialorder %v376, 0.0
          %v382 = vand.u32 %v376, 2147483648
          %v383 = vsel %vm381, %v382, %v380
          %s384 = vtos %v383
          %s385 = sadd.f32 %s374, %s384
          %s386 = smul.f32 %s385, 6.5e-05
          %s387 = sld [smem:[#allocation5 + $0x3]]
          %s388 = smul.f32 %s387, 0.00018
          %s389 = sadd.f32 %s386, %s388
          %s390 = sadd.f32 %s364, %s389
          %s391 = scalar_lea.smem [#allocation10], 0
          %392 = sst [smem:[%s391]] %s390
        $region36: #{tpu_custom_call.1} parent=27 // pred_fallthru
          _
        // Predicated region
        $region37: #{tpu_custom_call.1} parent=27 // pred_check
          %p393 = pneg %p86
        $region38: #{tpu_custom_call.1} parent=27 // pred_check_branch
          %395 = sbr.rel (%p393) target = $region40
        $region39: #{tpu_custom_call.1} parent=27 // pred_region
          %s397 = ssub.s32 16, 16
          %398 = vsyncadd [#allocation11], %s397
          %401 = dma.smem_to_hbm [#allocation10], 16, %s5, [#allocation11]
        $region40: #{tpu_custom_call.1} parent=27 // pred_fallthru
          _
        // Predicated region
        $region41: #{tpu_custom_call.1} parent=27 // pred_check
          %p402 = pneg %p86
        $region42: #{tpu_custom_call.1} parent=27 // pred_check_branch
          %404 = sbr.rel (%p402) target = $region44
        $region43: #{tpu_custom_call.1} parent=27 // pred_region
          %405 = dma.done [#allocation11], 16
        $region44: #{tpu_custom_call.1} parent=27 // pred_fallthru
          _
        %406 = sfence
      $region28: #{tpu_custom_call.1} parent=5 // pred_fallthru
        _
      %p407 = scmp.le.s32.totalorder 2, %s26
      // Predicated region
      $region45: #{tpu_custom_call.1} parent=5 // pred_check
        %p408 = pneg %p407
      $region46: #{tpu_custom_call.1} parent=5 // pred_check_branch
        %410 = sbr.rel (%p408) target = $region48
      $region47: #{tpu_custom_call.1} parent=5 // pred_region
        %s411 = ssub.s32 %s26, 2
      $region48: #{tpu_custom_call.1} parent=5 // pred_fallthru
        _
    $region6: #{tpu_custom_call.1} parent=1 // loop_footer
      %s30 = sadd.s32 1, %s26
    $region7: #{tpu_custom_call.1} parent=1 // loop_footer_branch
      %25 = sbr.rel target = $region3
    $region8: #{tpu_custom_call.1} parent=1 // loop_exit
      _
    %412 = vsyncpa [#allocation11], 1
    %s413 = scalar_lea.sflag [#allocation11], 1
    %414 = vsyncpa %s413, 1

</llo_original>
